<compile_context>
chip_gen: v6e
topology: v6e:2x2x1
jax: 0.10.0
libtpu: 0.0.40
codegen_flags: <defaults>
</compile_context>

<pallas_src>
import functools

import jax
import jax.numpy as jnp
from jax.experimental import pallas as pl
from jax.experimental.pallas import tpu as pltpu


def _round_up(v, m):
    return (v + m - 1) // m * m


# ----------------------------------------------------------------------------
# Fused Pallas kernel: all GraphSAGE layers in one invocation.
#   per layer:  proj = X @ [W_self | W_neigh]             (one MXU pass, N = 2*Dp)
#               out  = proj[:, :Dp] + A @ proj[:, Dp:] + b (reassociated neighbour path)
#               out  = relu(out)   (all but last layer)
# ----------------------------------------------------------------------------
def _gnn_fused_kernel(a_ref, x_ref, w_ref, b_ref, o_ref, *, num_layers, d_pad):
    a = a_ref[...]                                            # [Np, Np]   bf16
    h = x_ref[...]                                            # [Np, Dp]   bf16 (layer-0 operand)
    for li in range(num_layers):                              # static layer loop
        w = w_ref[li]                                         # [Dp, 2*Dp] bf16  ([W_self | W_neigh])
        proj = jnp.dot(h.astype(jnp.bfloat16), w,
                       preferred_element_type=jnp.float32)    # [Np, 2*Dp] f32
        h_self = proj[:, :d_pad]                              # X @ W_self      (128-aligned slice)
        h_pre = proj[:, d_pad:]                               # X @ W_neigh
        agg = jnp.dot(a, h_pre.astype(jnp.bfloat16),
                      preferred_element_type=jnp.float32)     # A @ (X @ W_neigh)
        h = h_self + agg + b_ref[li]                          # [Np, Dp] f32 (bias [1, Dp] broadcasts)
        if li < num_layers - 1:
            h = jnp.maximum(h, 0.0)                           # ReLU
            # Dropout(p=0.5) in eval/inference mode == identity.
    o_ref[...] = h.astype(o_ref.dtype)


def gnn_fused(a_pad, x_pad, w_stacked, b_stacked, *, num_layers, d_pad, n_pad):
    kernel = functools.partial(_gnn_fused_kernel, num_layers=num_layers, d_pad=d_pad)
    # Advisory cost hint (per layer: N x Dp x 2Dp projection + N x N x Dp aggregation).
    flops = num_layers * (2 * n_pad * d_pad * (2 * d_pad) + 2 * n_pad * n_pad * d_pad)
    bytes_accessed = (a_pad.size * 2 + x_pad.size * 2 + w_stacked.size * 2
                      + b_stacked.size * 4 + n_pad * d_pad * 4)
    return pl.pallas_call(
        kernel,
        out_shape=jax.ShapeDtypeStruct((n_pad, d_pad), jnp.float32),
        in_specs=[pl.BlockSpec(memory_space=pltpu.MemorySpace.VMEM)] * 4,
        out_specs=pl.BlockSpec(memory_space=pltpu.MemorySpace.VMEM),
        cost_estimate=pl.CostEstimate(flops=flops, transcendentals=0,
                                      bytes_accessed=bytes_accessed),
    )(a_pad, x_pad, w_stacked, b_stacked)


# ----------------------------------------------------------------------------
# Glue (plain JAX): graph densification, parameter packing, padding.
# ----------------------------------------------------------------------------
def build_norm_adj(edge_index, edge_weight, num_nodes):
    """A_norm[dst, src] = w(dst<-src) / in_degree(dst)  (PyG SAGEConv mean aggregation)."""
    src = edge_index[0]
    dst = edge_index[1]
    a = jnp.zeros((num_nodes, num_nodes), jnp.float32).at[dst, src].add(
        edge_weight.astype(jnp.float32))
    deg = jnp.zeros((num_nodes,), jnp.float32).at[dst].add(1.0)
    deg = jnp.maximum(deg, 1.0)
    return a / deg[:, None]


def init_gnn_params(key, input_dim, hidden_dim, output_dim, num_layers=3):
    dims = [input_dim] + [hidden_dim] * (num_layers - 1) + [output_dim]
    params = []
    for li in range(num_layers):
        din, dout = dims[li], dims[li + 1]
        key, k1, k2 = jax.random.split(key, 3)
        scale = 1.0 / jnp.sqrt(jnp.float32(din))
        w_self = jax.random.normal(k1, (din, dout), jnp.float32) * scale
        w_neigh = jax.random.normal(k2, (din, dout), jnp.float32) * scale
        bias = jnp.zeros((dout,), jnp.float32)
        params.append((w_self, w_neigh, bias))
    return params


def _pack_weights(params, d_pad):
    """Pad each layer's weights to [d_pad, d_pad], concat [W_self | W_neigh], stack layers."""
    w_list, b_list = [], []
    for (w_self, w_neigh, bias) in params:
        din, dout = w_self.shape
        ws = jnp.zeros((d_pad, d_pad), jnp.float32).at[:din, :dout].set(w_self)
        wn = jnp.zeros((d_pad, d_pad), jnp.float32).at[:din, :dout].set(w_neigh)
        w_list.append(jnp.concatenate([ws, wn], axis=1))          # [d_pad, 2*d_pad]
        b_list.append(jnp.zeros((1, d_pad), jnp.float32).at[0, :dout].set(bias))
    w_stacked = jnp.stack(w_list, axis=0).astype(jnp.bfloat16)    # [L, d_pad, 2*d_pad] bf16
    b_stacked = jnp.stack(b_list, axis=0)                         # [L, 1, d_pad]       f32
    return w_stacked, b_stacked


def gnn_forward(params, x, edge_index, edge_weight):
    n, din = x.shape
    dout_final = params[-1][0].shape[1]
    dims = [din] + [p[0].shape[1] for p in params]
    d_pad = _round_up(max(dims), 128)      # lane-dense features / output (incl. Dout=1 -> 128)
    n_pad = _round_up(n, 128)              # lane-dense A contraction dim + full MXU tiles

    a = build_norm_adj(edge_index, edge_weight, n)
    a_pad = (jnp.zeros((n_pad, n_pad), jnp.float32).at[:n, :n].set(a)
             .astype(jnp.bfloat16))
    x_pad = (jnp.zeros((n_pad, d_pad), jnp.float32).at[:n, :din].set(x)
             .astype(jnp.bfloat16))        # bf16 matmul operand anyway -> halve DMA
    w_stacked, b_stacked = _pack_weights(params, d_pad)

    out_pad = gnn_fused(a_pad, x_pad, w_stacked, b_stacked,
                        num_layers=len(params), d_pad=d_pad, n_pad=n_pad)
    return jnp.squeeze(out_pad[:n, :dout_final])


if __name__ == "__main__":
    key = jax.random.PRNGKey(0)
    k_feat, k_w, k_param = jax.random.split(key, 3)

    # Small deterministic graph: 16 nodes, ring connected both ways.
    num_nodes = 16
    input_dim = 32
    hidden_dim = 32
    output_dim = 1
    num_layers = 3

    nodes = jnp.arange(num_nodes, dtype=jnp.int32)
    src = jnp.concatenate([nodes, (nodes + 1) % num_nodes])
    dst = jnp.concatenate([(nodes + 1) % num_nodes, nodes])
    edge_index = jnp.stack([src, dst], axis=0)                       # [2, E]
    edge_weight = jax.random.uniform(k_w, (edge_index.shape[1],),
                                     jnp.float32, 0.5, 1.5)

    x = jax.random.normal(k_feat, (num_nodes, input_dim), jnp.float32)
    params = init_gnn_params(k_param, input_dim, hidden_dim, output_dim,
                             num_layers=num_layers)

    fwd = jax.jit(gnn_forward)
    out = fwd(params, x, edge_index, edge_weight)
    out = jax.block_until_ready(out)
    assert out.shape == (num_nodes,), out.shape
    assert bool(jnp.all(jnp.isfinite(out)))
    print("KERNEL_OK")
</pallas_src>

<mosaic_0001>
module attributes {stable_mosaic.version = 11 : i64} {
  func.func private @main(%arg0: i32) attributes {dimension_semantics = [#tpu.dimension_semantics<core_parallel>], iteration_bounds = array<i64: 2>, tpu.core_type = #tpu.core_type<sc_scalar_subcore>, window_params = []} {
    return
  }
}

module attributes {stable_mosaic.version = 11 : i64} {
  func.func private @main(%arg0: i32) attributes {dimension_semantics = [#tpu.dimension_semantics<core_parallel>], iteration_bounds = array<i64: 2>, tpu.core_type = #tpu.core_type<sc_scalar_subcore>, window_params = []} {
    return
  }
}

module attributes {stable_mosaic.version = 11 : i64} {
  func.func @_gnn_fused_kernel(%arg0: memref<128x128xbf16, #tpu.memory_space<vmem>>, %arg1: memref<128x128xbf16, #tpu.memory_space<vmem>>, %arg2: memref<3x128x256xbf16, #tpu.memory_space<vmem>>, %arg3: memref<3x1x128xf32, #tpu.memory_space<vmem>>, %arg4: memref<128x128xf32, #tpu.memory_space<vmem>>) attributes {dimension_semantics = [], scalar_prefetch = 0 : i64, scratch_operands = 0 : i64, tpu.core_type = #tpu.core_type<tc>} {
    %c0 = arith.constant 0 : index
    %c0_0 = arith.constant 0 : index
    %0 = vector.load %arg0[%c0, %c0_0] : memref<128x128xbf16, #tpu.memory_space<vmem>>, vector<128x128xbf16>
    %c0_1 = arith.constant 0 : index
    %c0_2 = arith.constant 0 : index
    %1 = vector.load %arg1[%c0_1, %c0_2] : memref<128x128xbf16, #tpu.memory_space<vmem>>, vector<128x128xbf16>
    %c0_3 = arith.constant 0 : index
    %c0_4 = arith.constant 0 : index
    %c0_5 = arith.constant 0 : index
    %2 = vector.load %arg2[%c0_3, %c0_4, %c0_5] : memref<3x128x256xbf16, #tpu.memory_space<vmem>>, vector<1x128x256xbf16>
    %3 = vector.shape_cast %2 : vector<1x128x256xbf16> to vector<128x256xbf16>
    %cst = arith.constant dense<0.000000e+00> : vector<128x256xf32>
    %4 = tpu.matmul %1, %3, %cst {dimension_numbers = #tpu.dot_dimension_numbers<[1], [0], [0], [1], [0, 0, 1, 1], [], []>} : vector<128x128xbf16>, vector<128x256xbf16>, vector<128x256xf32> -> vector<128x256xf32>
    %5 = vector.extract_strided_slice %4 {offsets = [0, 0], sizes = [128, 128], strides = [1, 1]} : vector<128x256xf32> to vector<128x128xf32>
    %6 = vector.extract_strided_slice %4 {offsets = [0, 128], sizes = [128, 128], strides = [1, 1]} : vector<128x256xf32> to vector<128x128xf32>
    %7 = arith.truncf %6 : vector<128x128xf32> to vector<128x128xbf16>
    %cst_6 = arith.constant dense<0.000000e+00> : vector<128x128xf32>
    %8 = tpu.matmul %0, %7, %cst_6 {dimension_numbers = #tpu.dot_dimension_numbers<[1], [0], [0], [1], [0, 0, 1, 1], [], []>} : vector<128x128xbf16>, vector<128x128xbf16>, vector<128x128xf32> -> vector<128x128xf32>
    %9 = arith.addf %5, %8 : vector<128x128xf32>
    %c0_7 = arith.constant 0 : index
    %c0_8 = arith.constant 0 : index
    %c0_9 = arith.constant 0 : index
    %10 = vector.load %arg3[%c0_7, %c0_8, %c0_9] : memref<3x1x128xf32, #tpu.memory_space<vmem>>, vector<1x1x128xf32>
    %11 = vector.shape_cast %10 : vector<1x1x128xf32> to vector<1x128xf32>
    %12 = vector.broadcast %11 : vector<1x128xf32> to vector<128x128xf32>
    %13 = arith.addf %9, %12 : vector<128x128xf32>
    %cst_10 = arith.constant 0.000000e+00 : f32
    %14 = vector.broadcast %cst_10 : f32 to vector<128x128xf32>
    %15 = arith.maximumf %13, %14 : vector<128x128xf32>
    %c1 = arith.constant 1 : index
    %c0_11 = arith.constant 0 : index
    %c0_12 = arith.constant 0 : index
    %16 = vector.load %arg2[%c1, %c0_11, %c0_12] : memref<3x128x256xbf16, #tpu.memory_space<vmem>>, vector<1x128x256xbf16>
    %17 = vector.shape_cast %16 : vector<1x128x256xbf16> to vector<128x256xbf16>
    %18 = arith.truncf %15 : vector<128x128xf32> to vector<128x128xbf16>
    %cst_13 = arith.constant dense<0.000000e+00> : vector<128x256xf32>
    %19 = tpu.matmul %18, %17, %cst_13 {dimension_numbers = #tpu.dot_dimension_numbers<[1], [0], [0], [1], [0, 0, 1, 1], [], []>} : vector<128x128xbf16>, vector<128x256xbf16>, vector<128x256xf32> -> vector<128x256xf32>
    %20 = vector.extract_strided_slice %19 {offsets = [0, 0], sizes = [128, 128], strides = [1, 1]} : vector<128x256xf32> to vector<128x128xf32>
    %21 = vector.extract_strided_slice %19 {offsets = [0, 128], sizes = [128, 128], strides = [1, 1]} : vector<128x256xf32> to vector<128x128xf32>
    %22 = arith.truncf %21 : vector<128x128xf32> to vector<128x128xbf16>
    %cst_14 = arith.constant dense<0.000000e+00> : vector<128x128xf32>
    %23 = tpu.matmul %0, %22, %cst_14 {dimension_numbers = #tpu.dot_dimension_numbers<[1], [0], [0], [1], [0, 0, 1, 1], [], []>} : vector<128x128xbf16>, vector<128x128xbf16>, vector<128x128xf32> -> vector<128x128xf32>
    %24 = arith.addf %20, %23 : vector<128x128xf32>
    %c1_15 = arith.constant 1 : index
    %c0_16 = arith.constant 0 : index
    %c0_17 = arith.constant 0 : index
    %25 = vector.load %arg3[%c1_15, %c0_16, %c0_17] : memref<3x1x128xf32, #tpu.memory_space<vmem>>, vector<1x1x128xf32>
    %26 = vector.shape_cast %25 : vector<1x1x128xf32> to vector<1x128xf32>
    %27 = vector.broadcast %26 : vector<1x128xf32> to vector<128x128xf32>
    %28 = arith.addf %24, %27 : vector<128x128xf32>
    %cst_18 = arith.constant 0.000000e+00 : f32
    %29 = vector.broadcast %cst_18 : f32 to vector<128x128xf32>
    %30 = arith.maximumf %28, %29 : vector<128x128xf32>
    %c2 = arith.constant 2 : index
    %c0_19 = arith.constant 0 : index
    %c0_20 = arith.constant 0 : index
    %31 = vector.load %arg2[%c2, %c0_19, %c0_20] : memref<3x128x256xbf16, #tpu.memory_space<vmem>>, vector<1x128x256xbf16>
    %32 = vector.shape_cast %31 : vector<1x128x256xbf16> to vector<128x256xbf16>
    %33 = arith.truncf %30 : vector<128x128xf32> to vector<128x128xbf16>
    %cst_21 = arith.constant dense<0.000000e+00> : vector<128x256xf32>
    %34 = tpu.matmul %33, %32, %cst_21 {dimension_numbers = #tpu.dot_dimension_numbers<[1], [0], [0], [1], [0, 0, 1, 1], [], []>} : vector<128x128xbf16>, vector<128x256xbf16>, vector<128x256xf32> -> vector<128x256xf32>
    %35 = vector.extract_strided_slice %34 {offsets = [0, 0], sizes = [128, 128], strides = [1, 1]} : vector<128x256xf32> to vector<128x128xf32>
    %36 = vector.extract_strided_slice %34 {offsets = [0, 128], sizes = [128, 128], strides = [1, 1]} : vector<128x256xf32> to vector<128x128xf32>
    %37 = arith.truncf %36 : vector<128x128xf32> to vector<128x128xbf16>
    %cst_22 = arith.constant dense<0.000000e+00> : vector<128x128xf32>
    %38 = tpu.matmul %0, %37, %cst_22 {dimension_numbers = #tpu.dot_dimension_numbers<[1], [0], [0], [1], [0, 0, 1, 1], [], []>} : vector<128x128xbf16>, vector<128x128xbf16>, vector<128x128xf32> -> vector<128x128xf32>
    %39 = arith.addf %35, %38 : vector<128x128xf32>
    %c2_23 = arith.constant 2 : index
    %c0_24 = arith.constant 0 : index
    %c0_25 = arith.constant 0 : index
    %40 = vector.load %arg3[%c2_23, %c0_24, %c0_25] : memref<3x1x128xf32, #tpu.memory_space<vmem>>, vector<1x1x128xf32>
    %41 = vector.shape_cast %40 : vector<1x1x128xf32> to vector<1x128xf32>
    %42 = vector.broadcast %41 : vector<1x128xf32> to vector<128x128xf32>
    %43 = arith.addf %39, %42 : vector<128x128xf32>
    %c0_26 = arith.constant 0 : index
    %c0_27 = arith.constant 0 : index
    %44 = vector.load %arg4[%c0_26, %c0_27] : memref<128x128xf32, #tpu.memory_space<vmem>>, vector<128x128xf32>
    tpu.vector_store %arg4[%c0_26, %c0_27], %43 {strides = array<i32>} : memref<128x128xf32, #tpu.memory_space<vmem>>, vector<128x128xf32>,
    return
  }
}

</mosaic_0001>

<llo_original>
// kernel: gnn_forward.1
$region0: #{gnn_forward.1}
  #allocation0 [shape = 'u32[]', space=smem, size = 0x4, offset = 0x4, fixed_abs, tag = 'smem constant byte address 0x4 - core index']
  #allocation1 [shape = 'u32[144,128]{1,0:T(1,128)}', space=vmem, size = 0x12000, scoped, tag = 'internal scratch']
  %s0 = inlined_call_operand.vmem [shape: bf16[128,128], index: 0, kind: input, shape index: {}]
  %s1 = inlined_call_operand.vmem [shape: bf16[128,128], index: 1, kind: input, shape index: {}]
  %s2 = inlined_call_operand.vmem [shape: bf16[3,128,256], index: 2, kind: input, shape index: {}]
  %s3 = inlined_call_operand.vmem [shape: f32[3,1,128], index: 3, kind: input, shape index: {}]
  %s4 = inlined_call_operand.vmem [shape: f32[128,128], index: 4, kind: output, shape index: {}]
  %s5 = sld [smem:[#allocation0]]
  $region26: #{gnn_forward.1} parent=0
    _
  %s7 = ssub.s32 1, %s5
  %s8 = scalar_select 0, %s7, %s5
  // Predicated region
  $region2: #{gnn_forward.1} parent=0 // pred_check
    _
  $region3: #{gnn_forward.1} parent=0 // pred_check_branch
    %10 = sbr.rel (0) target = $region5
  $region4: #{gnn_forward.1} parent=0 // pred_region
    _
  $region5: #{gnn_forward.1} parent=0 // pred_fallthru
    _
  // Predicated region
  $region6: #{gnn_forward.1} parent=0 // pred_check
    _
  $region7: #{gnn_forward.1} parent=0 // pred_check_branch
    %12 = sbr.rel (0) target = $region9
  $region8: #{gnn_forward.1} parent=0 // pred_region
    _
  $region9: #{gnn_forward.1} parent=0 // pred_fallthru
    _
  // Predicated region
  $region10: #{gnn_forward.1} parent=0 // pred_check
    _
  $region11: #{gnn_forward.1} parent=0 // pred_check_branch
    %14 = sbr.rel (0) target = $region13
  $region12: #{gnn_forward.1} parent=0 // pred_region
    _
  $region13: #{gnn_forward.1} parent=0 // pred_fallthru
    _
  // Predicated region
  $region14: #{gnn_forward.1} parent=0 // pred_check
    _
  $region15: #{gnn_forward.1} parent=0 // pred_check_branch
    %16 = sbr.rel (0) target = $region17
  $region16: #{gnn_forward.1} parent=0 // pred_region
    _
  $region17: #{gnn_forward.1} parent=0 // pred_fallthru
    _
  %v18 = vld [vmem:[%s0] sm:$0xf]
  %v19 = vld [vmem:[%s0 + $0x4] sm:$0xf]
  %v20 = vld [vmem:[%s0 + $0x8] sm:$0xf]
  %v21 = vld [vmem:[%s0 + $0xc] sm:$0xf]
  %v22 = vld [vmem:[%s0 + $0x10] sm:$0xf]
  %v23 = vld [vmem:[%s0 + $0x14] sm:$0xf]
  %v24 = vld [vmem:[%s0 + $0x18] sm:$0xf]
  %v25 = vld [vmem:[%s0 + $0x1c] sm:$0xf]
  %v26 = vld [vmem:[%s0 + $0x20] sm:$0xf]
  %v27 = vld [vmem:[%s0 + $0x24] sm:$0xf]
  %v28 = vld [vmem:[%s0 + $0x28] sm:$0xf]
  %v29 = vld [vmem:[%s0 + $0x2c] sm:$0xf]
  %v30 = vld [vmem:[%s0 + $0x30] sm:$0xf]
  %v31 = vld [vmem:[%s0 + $0x34] sm:$0xf]
  %v32 = vld [vmem:[%s0 + $0x38] sm:$0xf]
  %v33 = vld [vmem:[%s0 + $0x3c] sm:$0xf]
  %v34 = vld [vmem:[%s1] sm:$0xf]
  %v35 = vld [vmem:[%s1 + $0x4] sm:$0xf]
  %v36 = vld [vmem:[%s1 + $0x8] sm:$0xf]
  %v37 = vld [vmem:[%s1 + $0xc] sm:$0xf]
  %v38 = vld [vmem:[%s1 + $0x10] sm:$0xf]
  %v39 = vld [vmem:[%s1 + $0x14] sm:$0xf]
  %v40 = vld [vmem:[%s1 + $0x18] sm:$0xf]
  %v41 = vld [vmem:[%s1 + $0x1c] sm:$0xf]
  %v42 = vld [vmem:[%s1 + $0x20] sm:$0xf]
  %v43 = vld [vmem:[%s1 + $0x24] sm:$0xf]
  %v44 = vld [vmem:[%s1 + $0x28] sm:$0xf]
  %v45 = vld [vmem:[%s1 + $0x2c] sm:$0xf]
  %v46 = vld [vmem:[%s1 + $0x30] sm:$0xf]
  %v47 = vld [vmem:[%s1 + $0x34] sm:$0xf]
  %v48 = vld [vmem:[%s1 + $0x38] sm:$0xf]
  %v49 = vld [vmem:[%s1 + $0x3c] sm:$0xf]
  %v50 = vld [vmem:[%s2] sm:$0xff]
  %v51 = vld [vmem:[%s2 + $0x8] sm:$0xff]
  %v52 = vld [vmem:[%s2 + $0x10] sm:$0xff]
  %v53 = vld [vmem:[%s2 + $0x18] sm:$0xff]
  %v54 = vld [vmem:[%s2 + $0x20] sm:$0xff]
  %v55 = vld [vmem:[%s2 + $0x28] sm:$0xff]
  %v56 = vld [vmem:[%s2 + $0x30] sm:$0xff]
  %v57 = vld [vmem:[%s2 + $0x38] sm:$0xff]
  %v58 = vld [vmem:[%s2 + $0x40] sm:$0xff]
  %v59 = vld [vmem:[%s2 + $0x48] sm:$0xff]
  %v60 = vld [vmem:[%s2 + $0x50] sm:$0xff]
  %v61 = vld [vmem:[%s2 + $0x58] sm:$0xff]
  %v62 = vld [vmem:[%s2 + $0x60] sm:$0xff]
  %v63 = vld [vmem:[%s2 + $0x68] sm:$0xff]
  %v64 = vld [vmem:[%s2 + $0x70] sm:$0xff]
  %v65 = vld [vmem:[%s2 + $0x78] sm:$0xff]
  %v82 = vunpack.c.l.b16 %v34
  %v83 = vunpack.c.l.b16 %v35
  %v84 = vunpack.c.l.b16 %v36
  %v85 = vunpack.c.l.b16 %v37
  %v86 = vunpack.c.l.b16 %v38
  %v87 = vunpack.c.l.b16 %v39
  %v88 = vunpack.c.l.b16 %v40
  %v89 = vunpack.c.l.b16 %v41
  %v90 = vunpack.c.l.b16 %v42
  %v91 = vunpack.c.l.b16 %v43
  %v92 = vunpack.c.l.b16 %v44
  %v93 = vunpack.c.l.b16 %v45
  %v94 = vunpack.c.l.b16 %v46
  %v95 = vunpack.c.l.b16 %v47
  %v96 = vunpack.c.l.b16 %v48
  %v97 = vunpack.c.l.b16 %v49
  %v98 = vpack.c.b16 %v83, %v82
  %v99 = vpack.c.b16 %v85, %v84
  %v100 = vpack.c.b16 %v87, %v86
  %v101 = vpack.c.b16 %v89, %v88
  %v102 = vpack.c.b16 %v91, %v90
  %v103 = vpack.c.b16 %v93, %v92
  %v104 = vpack.c.b16 %v95, %v94
  %v105 = vpack.c.b16 %v97, %v96
  %v130 = vunpack.c.l.b16 %v50
  %v131 = vunpack.c.h.b16 %v50
  %v132 = vunpack.c.l.b16 %v51
  %v133 = vunpack.c.h.b16 %v51
  %v134 = vunpack.c.l.b16 %v52
  %v135 = vunpack.c.h.b16 %v52
  %v136 = vunpack.c.l.b16 %v53
  %v137 = vunpack.c.h.b16 %v53
  %v138 = vunpack.c.l.b16 %v54
  %v139 = vunpack.c.h.b16 %v54
  %v140 = vunpack.c.l.b16 %v55
  %v141 = vunpack.c.h.b16 %v55
  %v142 = vunpack.c.l.b16 %v56
  %v143 = vunpack.c.h.b16 %v56
  %v144 = vunpack.c.l.b16 %v57
  %v145 = vunpack.c.h.b16 %v57
  %v146 = vunpack.c.l.b16 %v58
  %v147 = vunpack.c.h.b16 %v58
  %v148 = vunpack.c.l.b16 %v59
  %v149 = vunpack.c.h.b16 %v59
  %v150 = vunpack.c.l.b16 %v60
  %v151 = vunpack.c.h.b16 %v60
  %v152 = vunpack.c.l.b16 %v61
  %v153 = vunpack.c.h.b16 %v61
  %v154 = vunpack.c.l.b16 %v62
  %v155 = vunpack.c.h.b16 %v62
  %v156 = vunpack.c.l.b16 %v63
  %v157 = vunpack.c.h.b16 %v63
  %v158 = vunpack.c.l.b16 %v64
  %v159 = vunpack.c.h.b16 %v64
  %v160 = vunpack.c.l.b16 %v65
  %v161 = vunpack.c.h.b16 %v65
  %v162 = vpack.c.b16 %v132, %v130
  %v163 = vpack.c.b16 %v133, %v131
  %v164 = vpack.c.b16 %v136, %v134
  %v165 = vpack.c.b16 %v137, %v135
  %v166 = vpack.c.b16 %v140, %v138
  %v167 = vpack.c.b16 %v141, %v139
  %v168 = vpack.c.b16 %v144, %v142
  %v169 = vpack.c.b16 %v145, %v143
  %v170 = vpack.c.b16 %v148, %v146
  %v171 = vpack.c.b16 %v149, %v147
  %v172 = vpack.c.b16 %v152, %v150
  %v173 = vpack.c.b16 %v153, %v151
  %v174 = vpack.c.b16 %v156, %v154
  %v175 = vpack.c.b16 %v157, %v155
  %v176 = vpack.c.b16 %v160, %v158
  %v177 = vpack.c.b16 %v161, %v159
  %194 = vmatprep.subr.bf16.mxu0 %v177
  %195 = vmatpush1.bf16.msra.mxu0 %v176
  %196 = vmatprep.subr.bf16.mxu0 %v175
  %197 = vmatpush1.bf16.msra.mxu0 %v174
  %198 = vmatprep.subr.bf16.mxu0 %v173
  %199 = vmatpush1.bf16.msra.mxu0 %v172
  %200 = vmatprep.subr.bf16.mxu0 %v171
  %201 = vmatpush1.bf16.msra.mxu0 %v170
  %202 = vmatprep.subr.bf16.mxu0 %v169
  %203 = vmatpush1.bf16.msra.mxu0 %v168
  %204 = vmatprep.subr.bf16.mxu0 %v167
  %205 = vmatpush1.bf16.msra.mxu0 %v166
  %206 = vmatprep.subr.bf16.mxu0 %v165
  %207 = vmatpush1.bf16.msra.mxu0 %v164
  %208 = vmatprep.subr.bf16.mxu0 %v163
  %209 = vmatpush1.bf16.msra.mxu0 %v162
  %210 = vmatprep.subr.bf16.mxu0 0
  %211 = vmatpush2.bf16.msra.mxu0 0
  %212 = vmatprep.subr.bf16.mxu0 0
  %213 = vmatpush2.bf16.msra.mxu0 0
  %214 = vmatprep.subr.bf16.mxu0 0
  %215 = vmatpush2.bf16.msra.mxu0 0
  %216 = vmatprep.subr.bf16.mxu0 0
  %217 = vmatpush2.bf16.msra.mxu0 0
  %218 = vmatprep.subr.bf16.mxu0 0
  %219 = vmatpush2.bf16.msra.mxu0 0
  %220 = vmatprep.subr.bf16.mxu0 0
  %221 = vmatpush2.bf16.msra.mxu0 0
  %222 = vmatprep.subr.bf16.mxu0 0
  %223 = vmatpush2.bf16.msra.mxu0 0
  %224 = vmatprep.subr.bf16.mxu0 0
  %225 = vmatpush2.bf16.msra.mxu0 0
  %226 = vmatprep.mubr.bf16.mxu0 0
  %227 = vmatmul.mubr.bf16.gmra.mxu0 %v98
  %v228 = vpop.f32.mrf.mxu0
  %v229 = vadd.f32 0.0, %v228
  %v230 = vpop.f32.mrf.mxu0
  %v231 = vadd.f32 0.0, %v230
  %v232 = vpop.f32.mrf.mxu0
  %v233 = vadd.f32 0.0, %v232
  %v234 = vpop.f32.mrf.mxu0
  %v235 = vadd.f32 0.0, %v234
  %236 = vmatprep.mubr.bf16.mxu0 0
  %237 = vmatmul.mubr.bf16.gmra.mxu0 %v99
  %v238 = vpop.f32.mrf.mxu0
  %v239 = vadd.f32 0.0, %v238
  %v240 = vpop.f32.mrf.mxu0
  %v241 = vadd.f32 0.0, %v240
  %v242 = vpop.f32.mrf.mxu0
  %v243 = vadd.f32 0.0, %v242
  %v244 = vpop.f32.mrf.mxu0
  %v245 = vadd.f32 0.0, %v244
  %246 = vmatprep.mubr.bf16.mxu0 0
  %247 = vmatmul.mubr.bf16.gmra.mxu0 %v100
  %v248 = vpop.f32.mrf.mxu0
  %v249 = vadd.f32 0.0, %v248
  %v250 = vpop.f32.mrf.mxu0
  %v251 = vadd.f32 0.0, %v250
  %v252 = vpop.f32.mrf.mxu0
  %v253 = vadd.f32 0.0, %v252
  %v254 = vpop.f32.mrf.mxu0
  %v255 = vadd.f32 0.0, %v254
  %256 = vmatprep.mubr.bf16.mxu0 0
  %257 = vmatmul.mubr.bf16.gmra.mxu0 %v101
  %v258 = vpop.f32.mrf.mxu0
  %v259 = vadd.f32 0.0, %v258
  %v260 = vpop.f32.mrf.mxu0
  %v261 = vadd.f32 0.0, %v260
  %v262 = vpop.f32.mrf.mxu0
  %v263 = vadd.f32 0.0, %v262
  %v264 = vpop.f32.mrf.mxu0
  %v265 = vadd.f32 0.0, %v264
  %266 = vmatprep.mubr.bf16.mxu0 0
  %267 = vmatmul.mubr.bf16.gmra.mxu0 %v102
  %v268 = vpop.f32.mrf.mxu0
  %v269 = vadd.f32 0.0, %v268
  %v270 = vpop.f32.mrf.mxu0
  %v271 = vadd.f32 0.0, %v270
  %v272 = vpop.f32.mrf.mxu0
  %v273 = vadd.f32 0.0, %v272
  %v274 = vpop.f32.mrf.mxu0
  %v275 = vadd.f32 0.0, %v274
  %276 = vmatprep.mubr.bf16.mxu0 0
  %277 = vmatmul.mubr.bf16.gmra.mxu0 %v103
  %v278 = vpop.f32.mrf.mxu0
  %v279 = vadd.f32 0.0, %v278
  %v280 = vpop.f32.mrf.mxu0
  %v281 = vadd.f32 0.0, %v280
  %v282 = vpop.f32.mrf.mxu0
  %v283 = vadd.f32 0.0, %v282
  %v284 = vpop.f32.mrf.mxu0
  %v285 = vadd.f32 0.0, %v284
  %286 = vmatprep.mubr.bf16.mxu0 0
  %287 = vmatmul.mubr.bf16.gmra.mxu0 %v104
  %v288 = vpop.f32.mrf.mxu0
  %v289 = vadd.f32 0.0, %v288
  %v290 = vpop.f32.mrf.mxu0
  %v291 = vadd.f32 0.0, %v290
  %v292 = vpop.f32.mrf.mxu0
  %v293 = vadd.f32 0.0, %v292
  %v294 = vpop.f32.mrf.mxu0
  %v295 = vadd.f32 0.0, %v294
  %296 = vmatprep.mubr.bf16.mxu0 0
  %297 = vmatmul.mubr.bf16.gmra.mxu0 %v105
  %v298 = vpop.f32.mrf.mxu0
  %v299 = vadd.f32 0.0, %v298
  %v300 = vpop.f32.mrf.mxu0
  %v301 = vadd.f32 0.0, %v300
  %v302 = vpop.f32.mrf.mxu0
  %v303 = vadd.f32 0.0, %v302
  %v304 = vpop.f32.mrf.mxu0
  %v305 = vadd.f32 0.0, %v304
  %306 = vdwg.mxu0
  %v307 = vpack.c.bf16 %v235, %v231
  %v308 = vpack.c.bf16 %v245, %v241
  %v309 = vpack.c.bf16 %v255, %v251
  %v310 = vpack.c.bf16 %v265, %v261
  %v311 = vpack.c.bf16 %v275, %v271
  %v312 = vpack.c.bf16 %v285, %v281
  %v313 = vpack.c.bf16 %v295, %v291
  %v314 = vpack.c.bf16 %v305, %v301
  %v331 = vunpack.c.l.b16 %v18
  %v332 = vunpack.c.l.b16 %v19
  %v333 = vunpack.c.l.b16 %v20
  %v334 = vunpack.c.l.b16 %v21
  %v335 = vunpack.c.l.b16 %v22
  %v336 = vunpack.c.l.b16 %v23
  %v337 = vunpack.c.l.b16 %v24
  %v338 = vunpack.c.l.b16 %v25
  %v339 = vunpack.c.l.b16 %v26
  %v340 = vunpack.c.l.b16 %v27
  %v341 = vunpack.c.l.b16 %v28
  %v342 = vunpack.c.l.b16 %v29
  %v343 = vunpack.c.l.b16 %v30
  %v344 = vunpack.c.l.b16 %v31
  %v345 = vunpack.c.l.b16 %v32
  %v346 = vunpack.c.l.b16 %v33
  %v347 = vpack.c.b16 %v332, %v331
  %v348 = vpack.c.b16 %v334, %v333
  %v349 = vpack.c.b16 %v336, %v335
  %v350 = vpack.c.b16 %v338, %v337
  %v351 = vpack.c.b16 %v340, %v339
  %v352 = vpack.c.b16 %v342, %v341
  %v353 = vpack.c.b16 %v344, %v343
  %v354 = vpack.c.b16 %v346, %v345
  %363 = vmatprep.subr.bf16.mxu0 0
  %364 = vmatpush1.bf16.msra.mxu0 %v314
  %365 = vmatprep.subr.bf16.mxu0 0
  %366 = vmatpush1.bf16.msra.mxu0 %v313
  %367 = vmatprep.subr.bf16.mxu0 0
  %368 = vmatpush1.bf16.msra.mxu0 %v312
  %369 = vmatprep.subr.bf16.mxu0 0
  %370 = vmatpush1.bf16.msra.mxu0 %v311
  %371 = vmatprep.subr.bf16.mxu0 0
  %372 = vmatpush1.bf16.msra.mxu0 %v310
  %373 = vmatprep.subr.bf16.mxu0 0
  %374 = vmatpush1.bf16.msra.mxu0 %v309
  %375 = vmatprep.subr.bf16.mxu0 0
  %376 = vmatpush1.bf16.msra.mxu0 %v308
  %377 = vmatprep.subr.bf16.mxu0 0
  %378 = vmatpush1.bf16.msra.mxu0 %v307
  %379 = vmatprep.subr.bf16.mxu0 0
  %380 = vmatpush2.bf16.msra.mxu0 0
  %381 = vmatprep.subr.bf16.mxu0 0
  %382 = vmatpush2.bf16.msra.mxu0 0
  %383 = vmatprep.subr.bf16.mxu0 0
  %384 = vmatpush2.bf16.msra.mxu0 0
  %385 = vmatprep.subr.bf16.mxu0 0
  %386 = vmatpush2.bf16.msra.mxu0 0
  %387 = vmatprep.subr.bf16.mxu0 0
  %388 = vmatpush2.bf16.msra.mxu0 0
  %389 = vmatprep.subr.bf16.mxu0 0
  %390 = vmatpush2.bf16.msra.mxu0 0
  %391 = vmatprep.subr.bf16.mxu0 0
  %392 = vmatpush2.bf16.msra.mxu0 0
  %393 = vmatprep.subr.bf16.mxu0 0
  %394 = vmatpush2.bf16.msra.mxu0 0
  %395 = vmatprep.mubr.bf16.mxu0 0
  %396 = vmatmul.mubr.bf16.gmra.mxu0 %v347
  %v397 = vpop.f32.mrf.mxu0
  %v398 = vadd.f32 0.0, %v397
  %v399 = vpop.f32.mrf.mxu0
  %v400 = vpop.f32.mrf.mxu0
  %v401 = vadd.f32 0.0, %v400
  %v402 = vpop.f32.mrf.mxu0
  %403 = vmatprep.mubr.bf16.mxu0 0
  %404 = vmatmul.mubr.bf16.gmra.mxu0 %v348
  %v405 = vpop.f32.mrf.mxu0
  %v406 = vadd.f32 0.0, %v405
  %v407 = vpop.f32.mrf.mxu0
  %v408 = vpop.f32.mrf.mxu0
  %v409 = vadd.f32 0.0, %v408
  %v410 = vpop.f32.mrf.mxu0
  %411 = vmatprep.mubr.bf16.mxu0 0
  %412 = vmatmul.mubr.bf16.gmra.mxu0 %v349
  %v413 = vpop.f32.mrf.mxu0
  %v414 = vadd.f32 0.0, %v413
  %v415 = vpop.f32.mrf.mxu0
  %v416 = vpop.f32.mrf.mxu0
  %v417 = vadd.f32 0.0, %v416
  %v418 = vpop.f32.mrf.mxu0
  %419 = vmatprep.mubr.bf16.mxu0 0
  %420 = vmatmul.mubr.bf16.gmra.mxu0 %v350
  %v421 = vpop.f32.mrf.mxu0
  %v422 = vadd.f32 0.0, %v421
  %v423 = vpop.f32.mrf.mxu0
  %v424 = vpop.f32.mrf.mxu0
  %v425 = vadd.f32 0.0, %v424
  %v426 = vpop.f32.mrf.mxu0
  %427 = vmatprep.mubr.bf16.mxu0 0
  %428 = vmatmul.mubr.bf16.gmra.mxu0 %v351
  %v429 = vpop.f32.mrf.mxu0
  %v430 = vadd.f32 0.0, %v429
  %v431 = vpop.f32.mrf.mxu0
  %v432 = vpop.f32.mrf.mxu0
  %v433 = vadd.f32 0.0, %v432
  %v434 = vpop.f32.mrf.mxu0
  %435 = vmatprep.mubr.bf16.mxu0 0
  %436 = vmatmul.mubr.bf16.gmra.mxu0 %v352
  %v437 = vpop.f32.mrf.mxu0
  %v438 = vadd.f32 0.0, %v437
  %v439 = vpop.f32.mrf.mxu0
  %v440 = vpop.f32.mrf.mxu0
  %v441 = vadd.f32 0.0, %v440
  %v442 = vpop.f32.mrf.mxu0
  %443 = vmatprep.mubr.bf16.mxu0 0
  %444 = vmatmul.mubr.bf16.gmra.mxu0 %v353
  %v445 = vpop.f32.mrf.mxu0
  %v446 = vadd.f32 0.0, %v445
  %v447 = vpop.f32.mrf.mxu0
  %v448 = vpop.f32.mrf.mxu0
  %v449 = vadd.f32 0.0, %v448
  %v450 = vpop.f32.mrf.mxu0
  %451 = vmatprep.mubr.bf16.mxu0 0
  %452 = vmatmul.mubr.bf16.gmra.mxu0 %v354
  %v453 = vpop.f32.mrf.mxu0
  %v454 = vadd.f32 0.0, %v453
  %v455 = vpop.f32.mrf.mxu0
  %v456 = vpop.f32.mrf.mxu0
  %v457 = vadd.f32 0.0, %v456
  %v458 = vpop.f32.mrf.mxu0
  %459 = vdwg.mxu0
  %v460 = vadd.f32 %v229, %v398
  %v461 = vadd.f32 %v233, %v401
  %v462 = vadd.f32 %v239, %v406
  %v463 = vadd.f32 %v243, %v409
  %v464 = vadd.f32 %v249, %v414
  %v465 = vadd.f32 %v253, %v417
  %v466 = vadd.f32 %v259, %v422
  %v467 = vadd.f32 %v263, %v425
  %v468 = vadd.f32 %v269, %v430
  %v469 = vadd.f32 %v273, %v433
  %v470 = vadd.f32 %v279, %v438
  %v471 = vadd.f32 %v283, %v441
  %v472 = vadd.f32 %v289, %v446
  %v473 = vadd.f32 %v293, %v449
  %v474 = vadd.f32 %v299, %v454
  %v475 = vadd.f32 %v303, %v457
  %v476 = vld [vmem:[%s3] sm:$0x1]
  %v478 = vlaneseq
  %v479 = vshrl.u32 %v478, 7
  %v480 = vsub.s32 0, %v479
  %v481 = vrot.slane %v476, %v480
  %v483 = vadd.f32 %v460, %v481
  %v484 = vadd.f32 %v461, %v481
  %v485 = vadd.f32 %v462, %v481
  %v486 = vadd.f32 %v463, %v481
  %v487 = vadd.f32 %v464, %v481
  %v488 = vadd.f32 %v465, %v481
  %v489 = vadd.f32 %v466, %v481
  %v490 = vadd.f32 %v467, %v481
  %v491 = vadd.f32 %v468, %v481
  %v492 = vadd.f32 %v469, %v481
  %v493 = vadd.f32 %v470, %v481
  %v494 = vadd.f32 %v471, %v481
  %v495 = vadd.f32 %v472, %v481
  %v496 = vadd.f32 %v473, %v481
  %v497 = vadd.f32 %v474, %v481
  %v498 = vadd.f32 %v475, %v481
  %v499 = vmax.f32 %v483, 0.0
  %v500 = vmax.f32 %v484, 0.0
  %v501 = vmax.f32 %v485, 0.0
  %v502 = vmax.f32 %v486, 0.0
  %v503 = vmax.f32 %v487, 0.0
  %v504 = vmax.f32 %v488, 0.0
  %v505 = vmax.f32 %v489, 0.0
  %v506 = vmax.f32 %v490, 0.0
  %v507 = vmax.f32 %v491, 0.0
  %v508 = vmax.f32 %v492, 0.0
  %v509 = vmax.f32 %v493, 0.0
  %v510 = vmax.f32 %v494, 0.0
  %v511 = vmax.f32 %v495, 0.0
  %v512 = vmax.f32 %v496, 0.0
  %v513 = vmax.f32 %v497, 0.0
  %v514 = vmax.f32 %v498, 0.0
  %s515 = scalar_lea.vmem %s2, 128
  %v516 = vld [vmem:[%s515] sm:$0xff]
  %v517 = vld [vmem:[%s515 + $0x8] sm:$0xff]
  %v518 = vld [vmem:[%s515 + $0x10] sm:$0xff]
  %v519 = vld [vmem:[%s515 + $0x18] sm:$0xff]
  %v520 = vld [vmem:[%s515 + $0x20] sm:$0xff]
  %v521 = vld [vmem:[%s515 + $0x28] sm:$0xff]
  %v522 = vld [vmem:[%s515 + $0x30] sm:$0xff]
  %v523 = vld [vmem:[%s515 + $0x38] sm:$0xff]
  %v524 = vld [vmem:[%s515 + $0x40] sm:$0xff]
  %v525 = vld [vmem:[%s515 + $0x48] sm:$0xff]
  %v526 = vld [vmem:[%s515 + $0x50] sm:$0xff]
  %v527 = vld [vmem:[%s515 + $0x58] sm:$0xff]
  %v528 = vld [vmem:[%s515 + $0x60] sm:$0xff]
  %v529 = vld [vmem:[%s515 + $0x68] sm:$0xff]
  %v530 = vld [vmem:[%s515 + $0x70] sm:$0xff]
  %v531 = vld [vmem:[%s515 + $0x78] sm:$0xff]
  %v532 = vpack.c.bf16 %v500, %v499
  %v533 = vpack.c.bf16 %v502, %v501
  %v534 = vpack.c.bf16 %v504, %v503
  %v535 = vpack.c.bf16 %v506, %v505
  %v536 = vpack.c.bf16 %v508, %v507
  %v537 = vpack.c.bf16 %v510, %v509
  %v538 = vpack.c.bf16 %v512, %v511
  %v539 = vpack.c.bf16 %v514, %v513
  %v556 = vunpack.c.l.b16 %v516
  %v557 = vunpack.c.h.b16 %v516
  %v558 = vunpack.c.l.b16 %v517
  %v559 = vunpack.c.h.b16 %v517
  %v560 = vunpack.c.l.b16 %v518
  %v561 = vunpack.c.h.b16 %v518
  %v562 = vunpack.c.l.b16 %v519
  %v563 = vunpack.c.h.b16 %v519
  %v564 = vunpack.c.l.b16 %v520
  %v565 = vunpack.c.h.b16 %v520
  %v566 = vunpack.c.l.b16 %v521
  %v567 = vunpack.c.h.b16 %v521
  %v568 = vunpack.c.l.b16 %v522
  %v569 = vunpack.c.h.b16 %v522
  %v570 = vunpack.c.l.b16 %v523
  %v571 = vunpack.c.h.b16 %v523
  %v572 = vunpack.c.l.b16 %v524
  %v573 = vunpack.c.h.b16 %v524
  %v574 = vunpack.c.l.b16 %v525
  %v575 = vunpack.c.h.b16 %v525
  %v576 = vunpack.c.l.b16 %v526
  %v577 = vunpack.c.h.b16 %v526
  %v578 = vunpack.c.l.b16 %v527
  %v579 = vunpack.c.h.b16 %v527
  %v580 = vunpack.c.l.b16 %v528
  %v581 = vunpack.c.h.b16 %v528
  %v582 = vunpack.c.l.b16 %v529
  %v583 = vunpack.c.h.b16 %v529
  %v584 = vunpack.c.l.b16 %v530
  %v585 = vunpack.c.h.b16 %v530
  %v586 = vunpack.c.l.b16 %v531
  %v587 = vunpack.c.h.b16 %v531
  %v588 = vpack.c.b16 %v558, %v556
  %v589 = vpack.c.b16 %v559, %v557
  %v590 = vpack.c.b16 %v562, %v560
  %v591 = vpack.c.b16 %v563, %v561
  %v592 = vpack.c.b16 %v566, %v564
  %v593 = vpack.c.b16 %v567, %v565
  %v594 = vpack.c.b16 %v570, %v568
  %v595 = vpack.c.b16 %v571, %v569
  %v596 = vpack.c.b16 %v574, %v572
  %v597 = vpack.c.b16 %v575, %v573
  %v598 = vpack.c.b16 %v578, %v576
  %v599 = vpack.c.b16 %v579, %v577
  %v600 = vpack.c.b16 %v582, %v580
  %v601 = vpack.c.b16 %v583, %v581
  %v602 = vpack.c.b16 %v586, %v584
  %v603 = vpack.c.b16 %v587, %v585
  %620 = vmatprep.subr.bf16.mxu0 %v603
  %621 = vmatpush1.bf16.msra.mxu0 %v602
  %622 = vmatprep.subr.bf16.mxu0 %v601
  %623 = vmatpush1.bf16.msra.mxu0 %v600
  %624 = vmatprep.subr.bf16.mxu0 %v599
  %625 = vmatpush1.bf16.msra.mxu0 %v598
  %626 = vmatprep.subr.bf16.mxu0 %v597
  %627 = vmatpush1.bf16.msra.mxu0 %v596
  %628 = vmatprep.subr.bf16.mxu0 %v595
  %629 = vmatpush1.bf16.msra.mxu0 %v594
  %630 = vmatprep.subr.bf16.mxu0 %v593
  %631 = vmatpush1.bf16.msra.mxu0 %v592
  %632 = vmatprep.subr.bf16.mxu0 %v591
  %633 = vmatpush1.bf16.msra.mxu0 %v590
  %634 = vmatprep.subr.bf16.mxu0 %v589
  %635 = vmatpush1.bf16.msra.mxu0 %v588
  %636 = vmatprep.subr.bf16.mxu0 0
  %637 = vmatpush2.bf16.msra.mxu0 0
  %638 = vmatprep.subr.bf16.mxu0 0
  %639 = vmatpush2.bf16.msra.mxu0 0
  %640 = vmatprep.subr.bf16.mxu0 0
  %641 = vmatpush2.bf16.msra.mxu0 0
  %642 = vmatprep.subr.bf16.mxu0 0
  %643 = vmatpush2.bf16.msra.mxu0 0
  %644 = vmatprep.subr.bf16.mxu0 0
  %645 = vmatpush2.bf16.msra.mxu0 0
  %646 = vmatprep.subr.bf16.mxu0 0
  %647 = vmatpush2.bf16.msra.mxu0 0
  %648 = vmatprep.subr.bf16.mxu0 0
  %649 = vmatpush2.bf16.msra.mxu0 0
  %650 = vmatprep.subr.bf16.mxu0 0
  %651 = vmatpush2.bf16.msra.mxu0 0
  %652 = vmatprep.mubr.bf16.mxu0 0
  %653 = vmatmul.mubr.bf16.gmra.mxu0 %v532
  %v654 = vpop.f32.mrf.mxu0
  %v655 = vadd.f32 0.0, %v654
  %v656 = vpop.f32.mrf.mxu0
  %v657 = vadd.f32 0.0, %v656
  %v658 = vpop.f32.mrf.mxu0
  %v659 = vadd.f32 0.0, %v658
  %v660 = vpop.f32.mrf.mxu0
  %v661 = vadd.f32 0.0, %v660
  %662 = vmatprep.mubr.bf16.mxu0 0
  %663 = vmatmul.mubr.bf16.gmra.mxu0 %v533
  %v664 = vpop.f32.mrf.mxu0
  %v665 = vadd.f32 0.0, %v664
  %v666 = vpop.f32.mrf.mxu0
  %v667 = vadd.f32 0.0, %v666
  %v668 = vpop.f32.mrf.mxu0
  %v669 = vadd.f32 0.0, %v668
  %v670 = vpop.f32.mrf.mxu0
  %v671 = vadd.f32 0.0, %v670
  %672 = vmatprep.mubr.bf16.mxu0 0
  %673 = vmatmul.mubr.bf16.gmra.mxu0 %v534
  %v674 = vpop.f32.mrf.mxu0
  %v675 = vadd.f32 0.0, %v674
  %v676 = vpop.f32.mrf.mxu0
  %v677 = vadd.f32 0.0, %v676
  %v678 = vpop.f32.mrf.mxu0
  %v679 = vadd.f32 0.0, %v678
  %v680 = vpop.f32.mrf.mxu0
  %v681 = vadd.f32 0.0, %v680
  %682 = vmatprep.mubr.bf16.mxu0 0
  %683 = vmatmul.mubr.bf16.gmra.mxu0 %v535
  %v684 = vpop.f32.mrf.mxu0
  %v685 = vadd.f32 0.0, %v684
  %v686 = vpop.f32.mrf.mxu0
  %v687 = vadd.f32 0.0, %v686
  %v688 = vpop.f32.mrf.mxu0
  %v689 = vadd.f32 0.0, %v688
  %v690 = vpop.f32.mrf.mxu0
  %v691 = vadd.f32 0.0, %v690
  %692 = vmatprep.mubr.bf16.mxu0 0
  %693 = vmatmul.mubr.bf16.gmra.mxu0 %v536
  %v694 = vpop.f32.mrf.mxu0
  %v695 = vadd.f32 0.0, %v694
  %v696 = vpop.f32.mrf.mxu0
  %v697 = vadd.f32 0.0, %v696
  %v698 = vpop.f32.mrf.mxu0
  %v699 = vadd.f32 0.0, %v698
  %v700 = vpop.f32.mrf.mxu0
  %v701 = vadd.f32 0.0, %v700
  %702 = vmatprep.mubr.bf16.mxu0 0
  %703 = vmatmul.mubr.bf16.gmra.mxu0 %v537
  %v704 = vpop.f32.mrf.mxu0
  %v705 = vadd.f32 0.0, %v704
  %v706 = vpop.f32.mrf.mxu0
  %v707 = vadd.f32 0.0, %v706
  %v708 = vpop.f32.mrf.mxu0
  %v709 = vadd.f32 0.0, %v708
  %v710 = vpop.f32.mrf.mxu0
  %v711 = vadd.f32 0.0, %v710
  %712 = vmatprep.mubr.bf16.mxu0 0
  %713 = vmatmul.mubr.bf16.gmra.mxu0 %v538
  %v714 = vpop.f32.mrf.mxu0
  %v715 = vadd.f32 0.0, %v714
  %v716 = vpop.f32.mrf.mxu0
  %v717 = vadd.f32 0.0, %v716
  %v718 = vpop.f32.mrf.mxu0
  %v719 = vadd.f32 0.0, %v718
  %v720 = vpop.f32.mrf.mxu0
  %v721 = vadd.f32 0.0, %v720
  %722 = vmatprep.mubr.bf16.mxu0 0
  %723 = vmatmul.mubr.bf16.gmra.mxu0 %v539
  %v724 = vpop.f32.mrf.mxu0
  %v725 = vadd.f32 0.0, %v724
  %v726 = vpop.f32.mrf.mxu0
  %v727 = vadd.f32 0.0, %v726
  %v728 = vpop.f32.mrf.mxu0
  %v729 = vadd.f32 0.0, %v728
  %v730 = vpop.f32.mrf.mxu0
  %v731 = vadd.f32 0.0, %v730
  %732 = vdwg.mxu0
  %v733 = vpack.c.bf16 %v661, %v657
  %v734 = vpack.c.bf16 %v671, %v667
  %v735 = vpack.c.bf16 %v681, %v677
  %v736 = vpack.c.bf16 %v691, %v687
  %v737 = vpack.c.bf16 %v701, %v697
  %v738 = vpack.c.bf16 %v711, %v707
  %v739 = vpack.c.bf16 %v721, %v717
  %v740 = vpack.c.bf16 %v731, %v727
  %741 = vmatprep.subr.bf16.mxu0 0
  %742 = vmatpush1.bf16.msra.mxu0 %v740
  %743 = vmatprep.subr.bf16.mxu0 0
  %744 = vmatpush1.bf16.msra.mxu0 %v739
  %745 = vmatprep.subr.bf16.mxu0 0
  %746 = vmatpush1.bf16.msra.mxu0 %v738
  %747 = vmatprep.subr.bf16.mxu0 0
  %748 = vmatpush1.bf16.msra.mxu0 %v737
  %749 = vmatprep.subr.bf16.mxu0 0
  %750 = vmatpush1.bf16.msra.mxu0 %v736
  %751 = vmatprep.subr.bf16.mxu0 0
  %752 = vmatpush1.bf16.msra.mxu0 %v735
  %753 = vmatprep.subr.bf16.mxu0 0
  %754 = vmatpush1.bf16.msra.mxu0 %v734
  %755 = vmatprep.subr.bf16.mxu0 0
  %756 = vmatpush1.bf16.msra.mxu0 %v733
  %757 = vmatprep.subr.bf16.mxu0 0
  %758 = vmatpush2.bf16.msra.mxu0 0
  %759 = vmatprep.subr.bf16.mxu0 0
  %760 = vmatpush2.bf16.msra.mxu0 0
  %761 = vmatprep.subr.bf16.mxu0 0
  %762 = vmatpush2.bf16.msra.mxu0 0
  %763 = vmatprep.subr.bf16.mxu0 0
  %764 = vmatpush2.bf16.msra.mxu0 0
  %765 = vmatprep.subr.bf16.mxu0 0
  %766 = vmatpush2.bf16.msra.mxu0 0
  %767 = vmatprep.subr.bf16.mxu0 0
  %768 = vmatpush2.bf16.msra.mxu0 0
  %769 = vmatprep.subr.bf16.mxu0 0
  %770 = vmatpush2.bf16.msra.mxu0 0
  %771 = vmatprep.subr.bf16.mxu0 0
  %772 = vmatpush2.bf16.msra.mxu0 0
  %773 = vmatprep.mubr.bf16.mxu0 0
  %774 = vmatmul.mubr.bf16.gmra.mxu0 %v347
  %v775 = vpop.f32.mrf.mxu0
  %v776 = vadd.f32 0.0, %v775
  %v777 = vpop.f32.mrf.mxu0
  %v778 = vpop.f32.mrf.mxu0
  %v779 = vadd.f32 0.0, %v778
  %v780 = vpop.f32.mrf.mxu0
  %781 = vmatprep.mubr.bf16.mxu0 0
  %782 = vmatmul.mubr.bf16.gmra.mxu0 %v348
  %v783 = vpop.f32.mrf.mxu0
  %v784 = vadd.f32 0.0, %v783
  %v785 = vpop.f32.mrf.mxu0
  %v786 = vpop.f32.mrf.mxu0
  %v787 = vadd.f32 0.0, %v786
  %v788 = vpop.f32.mrf.mxu0
  %789 = vmatprep.mubr.bf16.mxu0 0
  %790 = vmatmul.mubr.bf16.gmra.mxu0 %v349
  %v791 = vpop.f32.mrf.mxu0
  %v792 = vadd.f32 0.0, %v791
  %v793 = vpop.f32.mrf.mxu0
  %v794 = vpop.f32.mrf.mxu0
  %v795 = vadd.f32 0.0, %v794
  %v796 = vpop.f32.mrf.mxu0
  %797 = vmatprep.mubr.bf16.mxu0 0
  %798 = vmatmul.mubr.bf16.gmra.mxu0 %v350
  %v799 = vpop.f32.mrf.mxu0
  %v800 = vadd.f32 0.0, %v799
  %v801 = vpop.f32.mrf.mxu0
  %v802 = vpop.f32.mrf.mxu0
  %v803 = vadd.f32 0.0, %v802
  %v804 = vpop.f32.mrf.mxu0
  %805 = vmatprep.mubr.bf16.mxu0 0
  %806 = vmatmul.mubr.bf16.gmra.mxu0 %v351
  %v807 = vpop.f32.mrf.mxu0
  %v808 = vadd.f32 0.0, %v807
  %v809 = vpop.f32.mrf.mxu0
  %v810 = vpop.f32.mrf.mxu0
  %v811 = vadd.f32 0.0, %v810
  %v812 = vpop.f32.mrf.mxu0
  %813 = vmatprep.mubr.bf16.mxu0 0
  %814 = vmatmul.mubr.bf16.gmra.mxu0 %v352
  %v815 = vpop.f32.mrf.mxu0
  %v816 = vadd.f32 0.0, %v815
  %v817 = vpop.f32.mrf.mxu0
  %v818 = vpop.f32.mrf.mxu0
  %v819 = vadd.f32 0.0, %v818
  %v820 = vpop.f32.mrf.mxu0
  %821 = vmatprep.mubr.bf16.mxu0 0
  %822 = vmatmul.mubr.bf16.gmra.mxu0 %v353
  %v823 = vpop.f32.mrf.mxu0
  %v824 = vadd.f32 0.0, %v823
  %v825 = vpop.f32.mrf.mxu0
  %v826 = vpop.f32.mrf.mxu0
  %v827 = vadd.f32 0.0, %v826
  %v828 = vpop.f32.mrf.mxu0
  %829 = vmatprep.mubr.bf16.mxu0 0
  %830 = vmatmul.mubr.bf16.gmra.mxu0 %v354
  %v831 = vpop.f32.mrf.mxu0
  %v832 = vadd.f32 0.0, %v831
  %v833 = vpop.f32.mrf.mxu0
  %v834 = vpop.f32.mrf.mxu0
  %v835 = vadd.f32 0.0, %v834
  %v836 = vpop.f32.mrf.mxu0
  %837 = vdwg.mxu0
  %v838 = vadd.f32 %v655, %v776
  %v839 = vadd.f32 %v659, %v779
  %v840 = vadd.f32 %v665, %v784
  %v841 = vadd.f32 %v669, %v787
  %v842 = vadd.f32 %v675, %v792
  %v843 = vadd.f32 %v679, %v795
  %v844 = vadd.f32 %v685, %v800
  %v845 = vadd.f32 %v689, %v803
  %v846 = vadd.f32 %v695, %v808
  %v847 = vadd.f32 %v699, %v811
  %v848 = vadd.f32 %v705, %v816
  %v849 = vadd.f32 %v709, %v819
  %v850 = vadd.f32 %v715, %v824
  %v851 = vadd.f32 %v719, %v827
  %v852 = vadd.f32 %v725, %v832
  %v853 = vadd.f32 %v729, %v835
  %s854 = scalar_lea.vmem %s3, 1
  %v855 = vld [vmem:[%s854] sm:$0x1]
  %v857 = vlaneseq
  %v858 = vshrl.u32 %v857, 7
  %v859 = vsub.s32 0, %v858
  %v860 = vrot.slane %v855, %v859
  %v862 = vadd.f32 %v838, %v860
  %v863 = vadd.f32 %v839, %v860
  %v864 = vadd.f32 %v840, %v860
  %v865 = vadd.f32 %v841, %v860
  %v866 = vadd.f32 %v842, %v860
  %v867 = vadd.f32 %v843, %v860
  %v868 = vadd.f32 %v844, %v860
  %v869 = vadd.f32 %v845, %v860
  %v870 = vadd.f32 %v846, %v860
  %v871 = vadd.f32 %v847, %v860
  %v872 = vadd.f32 %v848, %v860
  %v873 = vadd.f32 %v849, %v860
  %v874 = vadd.f32 %v850, %v860
  %v875 = vadd.f32 %v851, %v860
  %v876 = vadd.f32 %v852, %v860
  %v877 = vadd.f32 %v853, %v860
  %v878 = vmax.f32 %v862, 0.0
  %v879 = vmax.f32 %v863, 0.0
  %v880 = vmax.f32 %v864, 0.0
  %v881 = vmax.f32 %v865, 0.0
  %v882 = vmax.f32 %v866, 0.0
  %v883 = vmax.f32 %v867, 0.0
  %v884 = vmax.f32 %v868, 0.0
  %v885 = vmax.f32 %v869, 0.0
  %v886 = vmax.f32 %v870, 0.0
  %v887 = vmax.f32 %v871, 0.0
  %v888 = vmax.f32 %v872, 0.0
  %v889 = vmax.f32 %v873, 0.0
  %v890 = vmax.f32 %v874, 0.0
  %v891 = vmax.f32 %v875, 0.0
  %v892 = vmax.f32 %v876, 0.0
  %v893 = vmax.f32 %v877, 0.0
  %s894 = scalar_lea.vmem %s2, 256
  %v895 = vld [vmem:[%s894] sm:$0xff]
  %v896 = vld [vmem:[%s894 + $0x8] sm:$0xff]
  %v897 = vld [vmem:[%s894 + $0x10] sm:$0xff]
  %v898 = vld [vmem:[%s894 + $0x18] sm:$0xff]
  %v899 = vld [vmem:[%s894 + $0x20] sm:$0xff]
  %v900 = vld [vmem:[%s894 + $0x28] sm:$0xff]
  %v901 = vld [vmem:[%s894 + $0x30] sm:$0xff]
  %v902 = vld [vmem:[%s894 + $0x38] sm:$0xff]
  %v903 = vld [vmem:[%s894 + $0x40] sm:$0xff]
  %v904 = vld [vmem:[%s894 + $0x48] sm:$0xff]
  %v905 = vld [vmem:[%s894 + $0x50] sm:$0xff]
  %v906 = vld [vmem:[%s894 + $0x58] sm:$0xff]
  %v907 = vld [vmem:[%s894 + $0x60] sm:$0xff]
  %v908 = vld [vmem:[%s894 + $0x68] sm:$0xff]
  %v909 = vld [vmem:[%s894 + $0x70] sm:$0xff]
  %v910 = vld [vmem:[%s894 + $0x78] sm:$0xff]
  %v911 = vpack.c.bf16 %v879, %v878
  %v912 = vpack.c.bf16 %v881, %v880
  %v913 = vpack.c.bf16 %v883, %v882
  %v914 = vpack.c.bf16 %v885, %v884
  %v915 = vpack.c.bf16 %v887, %v886
  %v916 = vpack.c.bf16 %v889, %v888
  %v917 = vpack.c.bf16 %v891, %v890
  %v918 = vpack.c.bf16 %v893, %v892
  %v935 = vunpack.c.l.b16 %v895
  %v936 = vunpack.c.h.b16 %v895
  %v937 = vunpack.c.l.b16 %v896
  %v938 = vunpack.c.h.b16 %v896
  %v939 = vunpack.c.l.b16 %v897
  %v940 = vunpack.c.h.b16 %v897
  %v941 = vunpack.c.l.b16 %v898
  %v942 = vunpack.c.h.b16 %v898
  %v943 = vunpack.c.l.b16 %v899
  %v944 = vunpack.c.h.b16 %v899
  %v945 = vunpack.c.l.b16 %v900
  %v946 = vunpack.c.h.b16 %v900
  %v947 = vunpack.c.l.b16 %v901
  %v948 = vunpack.c.h.b16 %v901
  %v949 = vunpack.c.l.b16 %v902
  %v950 = vunpack.c.h.b16 %v902
  %v951 = vunpack.c.l.b16 %v903
  %v952 = vunpack.c.h.b16 %v903
  %v953 = vunpack.c.l.b16 %v904
  %v954 = vunpack.c.h.b16 %v904
  %v955 = vunpack.c.l.b16 %v905
  %v956 = vunpack.c.h.b16 %v905
  %v957 = vunpack.c.l.b16 %v906
  %v958 = vunpack.c.h.b16 %v906
  %v959 = vunpack.c.l.b16 %v907
  %v960 = vunpack.c.h.b16 %v907
  %v961 = vunpack.c.l.b16 %v908
  %v962 = vunpack.c.h.b16 %v908
  %v963 = vunpack.c.l.b16 %v909
  %v964 = vunpack.c.h.b16 %v909
  %v965 = vunpack.c.l.b16 %v910
  %v966 = vunpack.c.h.b16 %v910
  %v967 = vpack.c.b16 %v937, %v935
  %v968 = vpack.c.b16 %v938, %v936
  %v969 = vpack.c.b16 %v941, %v939
  %v970 = vpack.c.b16 %v942, %v940
  %v971 = vpack.c.b16 %v945, %v943
  %v972 = vpack.c.b16 %v946, %v944
  %v973 = vpack.c.b16 %v949, %v947
  %v974 = vpack.c.b16 %v950, %v948
  %v975 = vpack.c.b16 %v953, %v951
  %v976 = vpack.c.b16 %v954, %v952
  %v977 = vpack.c.b16 %v957, %v955
  %v978 = vpack.c.b16 %v958, %v956
  %v979 = vpack.c.b16 %v961, %v959
  %v980 = vpack.c.b16 %v962, %v960
  %v981 = vpack.c.b16 %v965, %v963
  %v982 = vpack.c.b16 %v966, %v964
  %999 = vmatprep.subr.bf16.mxu0 %v982
  %1000 = vmatpush1.bf16.msra.mxu0 %v981
  %1001 = vmatprep.subr.bf16.mxu0 %v980
  %1002 = vmatpush1.bf16.msra.mxu0 %v979
  %1003 = vmatprep.subr.bf16.mxu0 %v978
  %1004 = vmatpush1.bf16.msra.mxu0 %v977
  %1005 = vmatprep.subr.bf16.mxu0 %v976
  %1006 = vmatpush1.bf16.msra.mxu0 %v975
  %1007 = vmatprep.subr.bf16.mxu0 %v974
  %1008 = vmatpush1.bf16.msra.mxu0 %v973
  %1009 = vmatprep.subr.bf16.mxu0 %v972
  %1010 = vmatpush1.bf16.msra.mxu0 %v971
  %1011 = vmatprep.subr.bf16.mxu0 %v970
  %1012 = vmatpush1.bf16.msra.mxu0 %v969
  %1013 = vmatprep.subr.bf16.mxu0 %v968
  %1014 = vmatpush1.bf16.msra.mxu0 %v967
  %1015 = vmatprep.subr.bf16.mxu0 0
  %1016 = vmatpush2.bf16.msra.mxu0 0
  %1017 = vmatprep.subr.bf16.mxu0 0
  %1018 = vmatpush2.bf16.msra.mxu0 0
  %1019 = vmatprep.subr.bf16.mxu0 0
  %1020 = vmatpush2.bf16.msra.mxu0 0
  %1021 = vmatprep.subr.bf16.mxu0 0
  %1022 = vmatpush2.bf16.msra.mxu0 0
  %1023 = vmatprep.subr.bf16.mxu0 0
  %1024 = vmatpush2.bf16.msra.mxu0 0
  %1025 = vmatprep.subr.bf16.mxu0 0
  %1026 = vmatpush2.bf16.msra.mxu0 0
  %1027 = vmatprep.subr.bf16.mxu0 0
  %1028 = vmatpush2.bf16.msra.mxu0 0
  %1029 = vmatprep.subr.bf16.mxu0 0
  %1030 = vmatpush2.bf16.msra.mxu0 0
  %1031 = vmatprep.mubr.bf16.mxu0 0
  %1032 = vmatmul.mubr.bf16.gmra.mxu0 %v911
  %v1033 = vpop.f32.mrf.mxu0
  %v1034 = vadd.f32 0.0, %v1033
  %v1035 = vpop.f32.mrf.mxu0
  %v1036 = vadd.f32 0.0, %v1035
  %v1037 = vpop.f32.mrf.mxu0
  %v1038 = vadd.f32 0.0, %v1037
  %v1039 = vpop.f32.mrf.mxu0
  %v1040 = vadd.f32 0.0, %v1039
  %1041 = vmatprep.mubr.bf16.mxu0 0
  %1042 = vmatmul.mubr.bf16.gmra.mxu0 %v912
  %v1043 = vpop.f32.mrf.mxu0
  %v1044 = vadd.f32 0.0, %v1043
  %v1045 = vpop.f32.mrf.mxu0
  %v1046 = vadd.f32 0.0, %v1045
  %v1047 = vpop.f32.mrf.mxu0
  %v1048 = vadd.f32 0.0, %v1047
  %v1049 = vpop.f32.mrf.mxu0
  %v1050 = vadd.f32 0.0, %v1049
  %1051 = vmatprep.mubr.bf16.mxu0 0
  %1052 = vmatmul.mubr.bf16.gmra.mxu0 %v913
  %v1053 = vpop.f32.mrf.mxu0
  %v1054 = vadd.f32 0.0, %v1053
  %v1055 = vpop.f32.mrf.mxu0
  %v1056 = vadd.f32 0.0, %v1055
  %v1057 = vpop.f32.mrf.mxu0
  %v1058 = vadd.f32 0.0, %v1057
  %v1059 = vpop.f32.mrf.mxu0
  %v1060 = vadd.f32 0.0, %v1059
  %1061 = vmatprep.mubr.bf16.mxu0 0
  %1062 = vmatmul.mubr.bf16.gmra.mxu0 %v914
  %v1063 = vpop.f32.mrf.mxu0
  %v1064 = vadd.f32 0.0, %v1063
  %v1065 = vpop.f32.mrf.mxu0
  %v1066 = vadd.f32 0.0, %v1065
  %v1067 = vpop.f32.mrf.mxu0
  %v1068 = vadd.f32 0.0, %v1067
  %v1069 = vpop.f32.mrf.mxu0
  %v1070 = vadd.f32 0.0, %v1069
  %1071 = vmatprep.mubr.bf16.mxu0 0
  %1072 = vmatmul.mubr.bf16.gmra.mxu0 %v915
  %v1073 = vpop.f32.mrf.mxu0
  %v1074 = vadd.f32 0.0, %v1073
  %v1075 = vpop.f32.mrf.mxu0
  %v1076 = vadd.f32 0.0, %v1075
  %v1077 = vpop.f32.mrf.mxu0
  %v1078 = vadd.f32 0.0, %v1077
  %v1079 = vpop.f32.mrf.mxu0
  %v1080 = vadd.f32 0.0, %v1079
  %1081 = vmatprep.mubr.bf16.mxu0 0
  %1082 = vmatmul.mubr.bf16.gmra.mxu0 %v916
  %v1083 = vpop.f32.mrf.mxu0
  %v1084 = vadd.f32 0.0, %v1083
  %v1085 = vpop.f32.mrf.mxu0
  %v1086 = vadd.f32 0.0, %v1085
  %v1087 = vpop.f32.mrf.mxu0
  %v1088 = vadd.f32 0.0, %v1087
  %v1089 = vpop.f32.mrf.mxu0
  %v1090 = vadd.f32 0.0, %v1089
  %1091 = vmatprep.mubr.bf16.mxu0 0
  %1092 = vmatmul.mubr.bf16.gmra.mxu0 %v917
  %v1093 = vpop.f32.mrf.mxu0
  %v1094 = vadd.f32 0.0, %v1093
  %v1095 = vpop.f32.mrf.mxu0
  %v1096 = vadd.f32 0.0, %v1095
  %v1097 = vpop.f32.mrf.mxu0
  %v1098 = vadd.f32 0.0, %v1097
  %v1099 = vpop.f32.mrf.mxu0
  %v1100 = vadd.f32 0.0, %v1099
  %1101 = vmatprep.mubr.bf16.mxu0 0
  %1102 = vmatmul.mubr.bf16.gmra.mxu0 %v918
  %v1103 = vpop.f32.mrf.mxu0
  %v1104 = vadd.f32 0.0, %v1103
  %v1105 = vpop.f32.mrf.mxu0
  %v1106 = vadd.f32 0.0, %v1105
  %v1107 = vpop.f32.mrf.mxu0
  %v1108 = vadd.f32 0.0, %v1107
  %v1109 = vpop.f32.mrf.mxu0
  %v1110 = vadd.f32 0.0, %v1109
  %1111 = vdwg.mxu0
  %v1112 = vpack.c.bf16 %v1040, %v1036
  %v1113 = vpack.c.bf16 %v1050, %v1046
  %v1114 = vpack.c.bf16 %v1060, %v1056
  %v1115 = vpack.c.bf16 %v1070, %v1066
  %v1116 = vpack.c.bf16 %v1080, %v1076
  %v1117 = vpack.c.bf16 %v1090, %v1086
  %v1118 = vpack.c.bf16 %v1100, %v1096
  %v1119 = vpack.c.bf16 %v1110, %v1106
  %1120 = vmatprep.subr.bf16.mxu0 0
  %1121 = vmatpush1.bf16.msra.mxu0 %v1119
  %1122 = vmatprep.subr.bf16.mxu0 0
  %1123 = vmatpush1.bf16.msra.mxu0 %v1118
  %1124 = vmatprep.subr.bf16.mxu0 0
  %1125 = vmatpush1.bf16.msra.mxu0 %v1117
  %1126 = vmatprep.subr.bf16.mxu0 0
  %1127 = vmatpush1.bf16.msra.mxu0 %v1116
  %1128 = vmatprep.subr.bf16.mxu0 0
  %1129 = vmatpush1.bf16.msra.mxu0 %v1115
  %1130 = vmatprep.subr.bf16.mxu0 0
  %1131 = vmatpush1.bf16.msra.mxu0 %v1114
  %1132 = vmatprep.subr.bf16.mxu0 0
  %1133 = vmatpush1.bf16.msra.mxu0 %v1113
  %1134 = vmatprep.subr.bf16.mxu0 0
  %1135 = vmatpush1.bf16.msra.mxu0 %v1112
  %1136 = vmatprep.subr.bf16.mxu0 0
  %1137 = vmatpush2.bf16.msra.mxu0 0
  %1138 = vmatprep.subr.bf16.mxu0 0
  %1139 = vmatpush2.bf16.msra.mxu0 0
  %1140 = vmatprep.subr.bf16.mxu0 0
  %1141 = vmatpush2.bf16.msra.mxu0 0
  %1142 = vmatprep.subr.bf16.mxu0 0
  %1143 = vmatpush2.bf16.msra.mxu0 0
  %1144 = vmatprep.subr.bf16.mxu0 0
  %1145 = vmatpush2.bf16.msra.mxu0 0
  %1146 = vmatprep.subr.bf16.mxu0 0
  %1147 = vmatpush2.bf16.msra.mxu0 0
  %1148 = vmatprep.subr.bf16.mxu0 0
  %1149 = vmatpush2.bf16.msra.mxu0 0
  %1150 = vmatprep.subr.bf16.mxu0 0
  %1151 = vmatpush2.bf16.msra.mxu0 0
  %1152 = vmatprep.mubr.bf16.mxu0 0
  %1153 = vmatmul.mubr.bf16.gmra.mxu0 %v347
  %v1154 = vpop.f32.mrf.mxu0
  %v1155 = vadd.f32 0.0, %v1154
  %v1156 = vpop.f32.mrf.mxu0
  %v1157 = vpop.f32.mrf.mxu0
  %v1158 = vadd.f32 0.0, %v1157
  %v1159 = vpop.f32.mrf.mxu0
  %1160 = vmatprep.mubr.bf16.mxu0 0
  %1161 = vmatmul.mubr.bf16.gmra.mxu0 %v348
  %v1162 = vpop.f32.mrf.mxu0
  %v1163 = vadd.f32 0.0, %v1162
  %v1164 = vpop.f32.mrf.mxu0
  %v1165 = vpop.f32.mrf.mxu0
  %v1166 = vadd.f32 0.0, %v1165
  %v1167 = vpop.f32.mrf.mxu0
  %1168 = vmatprep.mubr.bf16.mxu0 0
  %1169 = vmatmul.mubr.bf16.gmra.mxu0 %v349
  %v1170 = vpop.f32.mrf.mxu0
  %v1171 = vadd.f32 0.0, %v1170
  %v1172 = vpop.f32.mrf.mxu0
  %v1173 = vpop.f32.mrf.mxu0
  %v1174 = vadd.f32 0.0, %v1173
  %v1175 = vpop.f32.mrf.mxu0
  %1176 = vmatprep.mubr.bf16.mxu0 0
  %1177 = vmatmul.mubr.bf16.gmra.mxu0 %v350
  %v1178 = vpop.f32.mrf.mxu0
  %v1179 = vadd.f32 0.0, %v1178
  %v1180 = vpop.f32.mrf.mxu0
  %v1181 = vpop.f32.mrf.mxu0
  %v1182 = vadd.f32 0.0, %v1181
  %v1183 = vpop.f32.mrf.mxu0
  %1184 = vmatprep.mubr.bf16.mxu0 0
  %1185 = vmatmul.mubr.bf16.gmra.mxu0 %v351
  %v1186 = vpop.f32.mrf.mxu0
  %v1187 = vadd.f32 0.0, %v1186
  %v1188 = vpop.f32.mrf.mxu0
  %v1189 = vpop.f32.mrf.mxu0
  %v1190 = vadd.f32 0.0, %v1189
  %v1191 = vpop.f32.mrf.mxu0
  %1192 = vmatprep.mubr.bf16.mxu0 0
  %1193 = vmatmul.mubr.bf16.gmra.mxu0 %v352
  %v1194 = vpop.f32.mrf.mxu0
  %v1195 = vadd.f32 0.0, %v1194
  %v1196 = vpop.f32.mrf.mxu0
  %v1197 = vpop.f32.mrf.mxu0
  %v1198 = vadd.f32 0.0, %v1197
  %v1199 = vpop.f32.mrf.mxu0
  %1200 = vmatprep.mubr.bf16.mxu0 0
  %1201 = vmatmul.mubr.bf16.gmra.mxu0 %v353
  %v1202 = vpop.f32.mrf.mxu0
  %v1203 = vadd.f32 0.0, %v1202
  %v1204 = vpop.f32.mrf.mxu0
  %v1205 = vpop.f32.mrf.mxu0
  %v1206 = vadd.f32 0.0, %v1205
  %v1207 = vpop.f32.mrf.mxu0
  %1208 = vmatprep.mubr.bf16.mxu0 0
  %1209 = vmatmul.mubr.bf16.gmra.mxu0 %v354
  %v1210 = vpop.f32.mrf.mxu0
  %v1211 = vadd.f32 0.0, %v1210
  %v1212 = vpop.f32.mrf.mxu0
  %v1213 = vpop.f32.mrf.mxu0
  %v1214 = vadd.f32 0.0, %v1213
  %v1215 = vpop.f32.mrf.mxu0
  %1216 = vdwg.mxu0
  %v1217 = vadd.f32 %v1034, %v1155
  %v1218 = vadd.f32 %v1038, %v1158
  %v1219 = vadd.f32 %v1044, %v1163
  %v1220 = vadd.f32 %v1048, %v1166
  %v1221 = vadd.f32 %v1054, %v1171
  %v1222 = vadd.f32 %v1058, %v1174
  %v1223 = vadd.f32 %v1064, %v1179
  %v1224 = vadd.f32 %v1068, %v1182
  %v1225 = vadd.f32 %v1074, %v1187
  %v1226 = vadd.f32 %v1078, %v1190
  %v1227 = vadd.f32 %v1084, %v1195
  %v1228 = vadd.f32 %v1088, %v1198
  %v1229 = vadd.f32 %v1094, %v1203
  %v1230 = vadd.f32 %v1098, %v1206
  %v1231 = vadd.f32 %v1104, %v1211
  %v1232 = vadd.f32 %v1108, %v1214
  %s1233 = scalar_lea.vmem %s3, 2
  %v1234 = vld [vmem:[%s1233] sm:$0x1]
  %v1236 = vlaneseq
  %v1237 = vshrl.u32 %v1236, 7
  %v1238 = vsub.s32 0, %v1237
  %v1239 = vrot.slane %v1234, %v1238
  %v1241 = vadd.f32 %v1217, %v1239
  %v1242 = vadd.f32 %v1218, %v1239
  %v1243 = vadd.f32 %v1219, %v1239
  %v1244 = vadd.f32 %v1220, %v1239
  %v1245 = vadd.f32 %v1221, %v1239
  %v1246 = vadd.f32 %v1222, %v1239
  %v1247 = vadd.f32 %v1223, %v1239
  %v1248 = vadd.f32 %v1224, %v1239
  %v1249 = vadd.f32 %v1225, %v1239
  %v1250 = vadd.f32 %v1226, %v1239
  %v1251 = vadd.f32 %v1227, %v1239
  %v1252 = vadd.f32 %v1228, %v1239
  %v1253 = vadd.f32 %v1229, %v1239
  %v1254 = vadd.f32 %v1230, %v1239
  %v1255 = vadd.f32 %v1231, %v1239
  %v1256 = vadd.f32 %v1232, %v1239
  %1257 = vst [vmem:[%s4] sm:$0xff] %v1241
  %1258 = vst [vmem:[%s4 + $0x8] sm:$0xff] %v1242
  %1259 = vst [vmem:[%s4 + $0x10] sm:$0xff] %v1243
  %1260 = vst [vmem:[%s4 + $0x18] sm:$0xff] %v1244
  %1261 = vst [vmem:[%s4 + $0x20] sm:$0xff] %v1245
  %1262 = vst [vmem:[%s4 + $0x28] sm:$0xff] %v1246
  %1263 = vst [vmem:[%s4 + $0x30] sm:$0xff] %v1247
  %1264 = vst [vmem:[%s4 + $0x38] sm:$0xff] %v1248
  %1265 = vst [vmem:[%s4 + $0x40] sm:$0xff] %v1249
  %1266 = vst [vmem:[%s4 + $0x48] sm:$0xff] %v1250
  %1267 = vst [vmem:[%s4 + $0x50] sm:$0xff] %v1251
  %1268 = vst [vmem:[%s4 + $0x58] sm:$0xff] %v1252
  %1269 = vst [vmem:[%s4 + $0x60] sm:$0xff] %v1253
  %1270 = vst [vmem:[%s4 + $0x68] sm:$0xff] %v1254
  %1271 = vst [vmem:[%s4 + $0x70] sm:$0xff] %v1255
  %1272 = vst [vmem:[%s4 + $0x78] sm:$0xff] %v1256
  // Predicated region
  $region18: #{gnn_forward.1} parent=0 // pred_check
    _
  $region19: #{gnn_forward.1} parent=0 // pred_check_branch
    %1274 = sbr.rel (0) target = $region21
  $region20: #{gnn_forward.1} parent=0 // pred_region
    _
  $region21: #{gnn_forward.1} parent=0 // pred_fallthru
    _
  // Predicated region
  $region22: #{gnn_forward.1} parent=0 // pred_check
    _
  $region23: #{gnn_forward.1} parent=0 // pred_check_branch
    %1276 = sbr.rel (0) target = $region25
  $region24: #{gnn_forward.1} parent=0 // pred_region
    _
  $region25: #{gnn_forward.1} parent=0 // pred_fallthru
    _

</llo_original>
